<compile_context>
chip_gen: v7x
topology: tpu7x:2x2x1
jax: 0.10.0
libtpu: 0.0.40
codegen_flags: <defaults>
</compile_context>

<pallas_src>
import jax
import jax.numpy as jnp
from jax.experimental import pallas as pl
from jax.experimental.pallas import tpu as pltpu

ZDIM = 8
INPUT_SIZE = 16
HIDDEN = 32
OUT_DIM = 2 * INPUT_SIZE - 1          # 31  (last Linear's true width)
OUT_PAD = 32                          # lane-padded output width
BATCH = 8
BN_EPS = 1e-5

# Row offsets inside the single packed parameter slab (all multiples of 8).
_W1_R0, _W1_R1 = 0, ZDIM                                 # rows   0:8   W1 (8, 32)
_W2_R0, _W2_R1 = _W1_R1, _W1_R1 + HIDDEN                 # rows   8:40  W2 (32, 32)
_W3_R0, _W3_R1 = _W2_R1, _W2_R1 + HIDDEN                 # rows  40:72  W3 (32, 32 padded)
_G1_R0, _G1_R1 = _W3_R1, _W3_R1 + BATCH                  # rows  72:80  gamma1 (bcast x8)
_BE1_R0, _BE1_R1 = _G1_R1, _G1_R1 + BATCH                # rows  80:88  beta1
_G2_R0, _G2_R1 = _BE1_R1, _BE1_R1 + BATCH                # rows  88:96  gamma2
_BE2_R0, _BE2_R1 = _G2_R1, _G2_R1 + BATCH                # rows  96:104 beta2
_B3_R0, _B3_R1 = _BE2_R1, _BE2_R1 + BATCH                # rows 104:112 b3 (padded, bcast x8)
_SLAB_ROWS = _B3_R1                                      # 112


def _decoder_kernel(z_ref, slab_ref, out_ref):
    """Whole forward pass, batch resident in VMEM, single lane-dense output slab."""
    z = z_ref[...]                                       # (B, ZDIM) f32

    # Static slices of the single packed parameter slab (no extra DMAs, no
    # sublane broadcasts: vector params are already replicated to B rows).
    w1 = slab_ref[_W1_R0:_W1_R1, :]                      # (8, 32)
    w2 = slab_ref[_W2_R0:_W2_R1, :]                      # (32, 32)
    w3 = slab_ref[_W3_R0:_W3_R1, :]                      # (32, 32), last col zero
    g1 = slab_ref[_G1_R0:_G1_R1, :]                      # (B, 32)
    be1 = slab_ref[_BE1_R0:_BE1_R1, :]                   # (B, 32)
    g2 = slab_ref[_G2_R0:_G2_R1, :]                      # (B, 32)
    be2 = slab_ref[_BE2_R0:_BE2_R1, :]                   # (B, 32)
    b3 = slab_ref[_B3_R0:_B3_R1, :]                      # (B, 32), last lane zero

    def bn_relu(h, g, be):
        # Train-mode BatchNorm1d: batch mean, biased batch variance.
        mean = jnp.mean(h, axis=0, keepdims=True)
        centered = h - mean
        var = jnp.mean(centered * centered, axis=0, keepdims=True)
        scale = jax.lax.rsqrt(var + BN_EPS) * g          # gamma folded into scale
        return jnp.maximum(centered * scale + be, 0.0)

    # Layer 0: Linear(8->32) + BN + ReLU.  Linear bias cancels in BN centering.
    h = jnp.dot(z, w1, preferred_element_type=jnp.float32)
    h = bn_relu(h, g1, be1)

    # Layer 1: Linear(32->32) + BN + ReLU.  Linear bias cancels in BN centering.
    h = jnp.dot(h, w2, preferred_element_type=jnp.float32)
    h = bn_relu(h, g2, be2)

    # Layer 2 (last): Linear(32 -> 31), lane-padded to 32. No BN / ReLU.
    scores = jnp.dot(h, w3, preferred_element_type=jnp.float32) + b3   # (B, 32)

    # sigmoid only on the bernoulli column (true index OUT_DIM-1 == 30);
    # padded lane 31 stays raw 0.0 and must be ignored by consumers.
    col = jax.lax.broadcasted_iota(jnp.int32, scores.shape, dimension=1)
    out_ref[...] = jnp.where(col == OUT_DIM - 1, jax.nn.sigmoid(scores), scores)


_COST = pl.CostEstimate(
    flops=2 * (BATCH * ZDIM * HIDDEN + 2 * BATCH * HIDDEN * HIDDEN),  # ~36.9 KFLOP
    transcendentals=2 * HIDDEN + BATCH * OUT_PAD,                      # rsqrt + sigmoid
    bytes_accessed=4 * (BATCH * ZDIM + _SLAB_ROWS * OUT_PAD + BATCH * OUT_PAD),
)


@jax.jit
def decoder_forward_packed(z, param_slab):
    """Hot path: returns the lane-padded (B, 32) output slab.

    Columns 0:15 = mu, 15:30 = sigma, 30 = sigmoid(bernoulli logit), 31 = pad (0).
    """
    b = z.shape[0]
    vmem_spec = pl.BlockSpec(memory_space=pltpu.MemorySpace.VMEM)
    return pl.pallas_call(
        _decoder_kernel,
        out_shape=jax.ShapeDtypeStruct((b, OUT_PAD), jnp.float32),
        in_specs=[vmem_spec, vmem_spec],
        out_specs=vmem_spec,
        cost_estimate=_COST,
    )(z, param_slab)


def split_outputs(packed):
    """Non-hot-path helper matching Decoder.forward's return signature."""
    mu = packed[:, : INPUT_SIZE - 1]                          # (B, 15)
    sigma = packed[:, INPUT_SIZE - 1 : 2 * (INPUT_SIZE - 1)]  # (B, 15)
    bern = packed[:, OUT_DIM - 1]                             # (B,)
    return mu, sigma, bern


def init_raw_params(key):
    """Unpacked parameters (PyTorch-like init); W stored pre-transposed (in, out)."""
    def linear_init(k, fan_in, fan_out):
        kw, kb = jax.random.split(k)
        bound = 1.0 / jnp.sqrt(fan_in)
        w = jax.random.uniform(kw, (fan_in, fan_out), jnp.float32, -bound, bound)
        b = jax.random.uniform(kb, (1, fan_out), jnp.float32, -bound, bound)
        return w, b

    k1, k2, k3 = jax.random.split(key, 3)
    w1, b1 = linear_init(k1, ZDIM, HIDDEN)
    w2, b2 = linear_init(k2, HIDDEN, HIDDEN)
    w3, b3 = linear_init(k3, HIDDEN, OUT_DIM)
    return dict(
        w1=w1, b1=b1,
        g1=jnp.ones((1, HIDDEN), jnp.float32), be1=jnp.zeros((1, HIDDEN), jnp.float32),
        w2=w2, b2=b2,
        g2=jnp.ones((1, HIDDEN), jnp.float32), be2=jnp.zeros((1, HIDDEN), jnp.float32),
        w3=w3, b3=b3,
    )


def pack_params(raw, batch=BATCH):
    """Pack all parameters into ONE DMA-friendly (112, 32) slab.

    b1/b2 are intentionally omitted: they cancel under train-mode BatchNorm.
    Vector params are pre-broadcast to `batch` sublanes so the kernel never
    does an on-chip sublane broadcast.
    """
    w3_pad = jnp.zeros((HIDDEN, OUT_PAD), jnp.float32).at[:, :OUT_DIM].set(raw["w3"])
    b3_pad = jnp.zeros((1, OUT_PAD), jnp.float32).at[:, :OUT_DIM].set(raw["b3"])

    def bcast(v):
        return jnp.broadcast_to(v, (batch, OUT_PAD))

    slab = jnp.concatenate(
        [raw["w1"], raw["w2"], w3_pad,
         bcast(raw["g1"]), bcast(raw["be1"]),
         bcast(raw["g2"]), bcast(raw["be2"]),
         bcast(b3_pad)],
        axis=0)
    assert slab.shape == (_SLAB_ROWS, OUT_PAD)
    return slab


def _reference_forward(z, raw):
    """Pure-JAX reference mirroring the PyTorch Decoder.forward (train-mode BN).

    Keeps the Linear biases b1/b2 so it also validates the bias-cancellation
    optimization in the kernel.
    """
    def bn(h, g, be):
        m = jnp.mean(h, axis=0, keepdims=True)
        v = jnp.mean((h - m) ** 2, axis=0, keepdims=True)
        return (h - m) / jnp.sqrt(v + BN_EPS) * g + be

    h = z @ raw["w1"] + raw["b1"]
    h = jnp.maximum(bn(h, raw["g1"], raw["be1"]), 0.0)
    h = h @ raw["w2"] + raw["b2"]
    h = jnp.maximum(bn(h, raw["g2"], raw["be2"]), 0.0)
    xhat = h @ raw["w3"] + raw["b3"]                      # (B, 31)
    xhat_gauss = xhat[:, :-1]
    xhat_bern = jax.nn.sigmoid(xhat[:, -1])
    mu = xhat_gauss[:, : INPUT_SIZE - 1]
    sigma = xhat_gauss[:, INPUT_SIZE - 1 :]
    return mu, sigma, xhat_bern


if __name__ == "__main__":
    key = jax.random.PRNGKey(0)
    kz, kp = jax.random.split(key)
    z = jax.random.normal(kz, (BATCH, ZDIM), jnp.float32)

    raw = init_raw_params(kp)
    param_slab = pack_params(raw)

    packed = decoder_forward_packed(z, param_slab)
    jax.block_until_ready(packed)

    mu, sigma, bern = split_outputs(packed)
    mu_ref, sigma_ref, bern_ref = _reference_forward(z, raw)

    assert packed.shape == (BATCH, OUT_PAD)
    assert mu.shape == (BATCH, INPUT_SIZE - 1)
    assert sigma.shape == (BATCH, INPUT_SIZE - 1)
    assert bern.shape == (BATCH,)
    assert jnp.allclose(mu, mu_ref, atol=1e-5, rtol=1e-5)
    assert jnp.allclose(sigma, sigma_ref, atol=1e-5, rtol=1e-5)
    assert jnp.allclose(bern, bern_ref, atol=1e-5, rtol=1e-5)

    print("KERNEL_OK")
</pallas_src>

<mosaic_0001>
module attributes {stable_mosaic.version = 11 : i64} {
  func.func @_decoder_kernel(%arg0: memref<8x8xf32, #tpu.memory_space<vmem>>, %arg1: memref<112x32xf32, #tpu.memory_space<vmem>>, %arg2: memref<8x32xf32, #tpu.memory_space<vmem>>) attributes {dimension_semantics = [], scalar_prefetch = 0 : i64, scratch_operands = 0 : i64, tpu.core_type = #tpu.core_type<tc>} {
    %c0 = arith.constant 0 : index
    %c0_0 = arith.constant 0 : index
    %0 = vector.load %arg0[%c0, %c0_0] : memref<8x8xf32, #tpu.memory_space<vmem>>, vector<8x8xf32>
    %c0_1 = arith.constant 0 : index
    %c0_2 = arith.constant 0 : index
    %1 = vector.load %arg1[%c0_1, %c0_2] : memref<112x32xf32, #tpu.memory_space<vmem>>, vector<8x32xf32>
    %c8 = arith.constant 8 : index
    %c0_3 = arith.constant 0 : index
    %2 = vector.load %arg1[%c8, %c0_3] : memref<112x32xf32, #tpu.memory_space<vmem>>, vector<32x32xf32>
    %c40 = arith.constant 40 : index
    %c0_4 = arith.constant 0 : index
    %3 = vector.load %arg1[%c40, %c0_4] : memref<112x32xf32, #tpu.memory_space<vmem>>, vector<32x32xf32>
    %c72 = arith.constant 72 : index
    %c0_5 = arith.constant 0 : index
    %4 = vector.load %arg1[%c72, %c0_5] : memref<112x32xf32, #tpu.memory_space<vmem>>, vector<8x32xf32>
    %c80 = arith.constant 80 : index
    %c0_6 = arith.constant 0 : index
    %5 = vector.load %arg1[%c80, %c0_6] : memref<112x32xf32, #tpu.memory_space<vmem>>, vector<8x32xf32>
    %c88 = arith.constant 88 : index
    %c0_7 = arith.constant 0 : index
    %6 = vector.load %arg1[%c88, %c0_7] : memref<112x32xf32, #tpu.memory_space<vmem>>, vector<8x32xf32>
    %c96 = arith.constant 96 : index
    %c0_8 = arith.constant 0 : index
    %7 = vector.load %arg1[%c96, %c0_8] : memref<112x32xf32, #tpu.memory_space<vmem>>, vector<8x32xf32>
    %c104 = arith.constant 104 : index
    %c0_9 = arith.constant 0 : index
    %8 = vector.load %arg1[%c104, %c0_9] : memref<112x32xf32, #tpu.memory_space<vmem>>, vector<8x32xf32>
    %cst = arith.constant dense<0.000000e+00> : vector<8x32xf32>
    %9 = tpu.matmul %0, %1, %cst {dimension_numbers = #tpu.dot_dimension_numbers<[1], [0], [0], [1], [0, 0, 1, 1], [], []>} : vector<8x8xf32>, vector<8x32xf32>, vector<8x32xf32> -> vector<8x32xf32>
    %cst_10 = arith.constant dense<0.000000e+00> : vector<32xf32>
    %10 = vector.multi_reduction <add>, %9, %cst_10 [0] : vector<8x32xf32> to vector<32xf32>
    %11 = vector.shape_cast %10 : vector<32xf32> to vector<1x32xf32>
    %cst_11 = arith.constant 8.000000e+00 : f32
    %12 = vector.broadcast %cst_11 : f32 to vector<1x32xf32>
    %13 = arith.divf %11, %12 : vector<1x32xf32>
    %14 = vector.broadcast %13 : vector<1x32xf32> to vector<8x32xf32>
    %15 = arith.subf %9, %14 : vector<8x32xf32>
    %16 = arith.mulf %15, %15 : vector<8x32xf32>
    %cst_12 = arith.constant dense<0.000000e+00> : vector<32xf32>
    %17 = vector.multi_reduction <add>, %16, %cst_12 [0] : vector<8x32xf32> to vector<32xf32>
    %18 = vector.shape_cast %17 : vector<32xf32> to vector<1x32xf32>
    %cst_13 = arith.constant 8.000000e+00 : f32
    %19 = vector.broadcast %cst_13 : f32 to vector<1x32xf32>
    %20 = arith.divf %18, %19 : vector<1x32xf32>
    %cst_14 = arith.constant 9.99999974E-6 : f32
    %21 = vector.broadcast %cst_14 : f32 to vector<1x32xf32>
    %22 = arith.addf %20, %21 : vector<1x32xf32>
    %23 = math.rsqrt %22 : vector<1x32xf32>
    %24 = vector.broadcast %23 : vector<1x32xf32> to vector<8x32xf32>
    %25 = arith.mulf %24, %4 : vector<8x32xf32>
    %26 = arith.mulf %15, %25 : vector<8x32xf32>
    %27 = arith.addf %26, %5 : vector<8x32xf32>
    %cst_15 = arith.constant 0.000000e+00 : f32
    %28 = vector.broadcast %cst_15 : f32 to vector<8x32xf32>
    %29 = arith.maximumf %27, %28 : vector<8x32xf32>
    %cst_16 = arith.constant dense<0.000000e+00> : vector<8x32xf32>
    %30 = tpu.matmul %29, %2, %cst_16 {dimension_numbers = #tpu.dot_dimension_numbers<[1], [0], [0], [1], [0, 0, 1, 1], [], []>} : vector<8x32xf32>, vector<32x32xf32>, vector<8x32xf32> -> vector<8x32xf32>
    %cst_17 = arith.constant dense<0.000000e+00> : vector<32xf32>
    %31 = vector.multi_reduction <add>, %30, %cst_17 [0] : vector<8x32xf32> to vector<32xf32>
    %32 = vector.shape_cast %31 : vector<32xf32> to vector<1x32xf32>
    %cst_18 = arith.constant 8.000000e+00 : f32
    %33 = vector.broadcast %cst_18 : f32 to vector<1x32xf32>
    %34 = arith.divf %32, %33 : vector<1x32xf32>
    %35 = vector.broadcast %34 : vector<1x32xf32> to vector<8x32xf32>
    %36 = arith.subf %30, %35 : vector<8x32xf32>
    %37 = arith.mulf %36, %36 : vector<8x32xf32>
    %cst_19 = arith.constant dense<0.000000e+00> : vector<32xf32>
    %38 = vector.multi_reduction <add>, %37, %cst_19 [0] : vector<8x32xf32> to vector<32xf32>
    %39 = vector.shape_cast %38 : vector<32xf32> to vector<1x32xf32>
    %cst_20 = arith.constant 8.000000e+00 : f32
    %40 = vector.broadcast %cst_20 : f32 to vector<1x32xf32>
    %41 = arith.divf %39, %40 : vector<1x32xf32>
    %cst_21 = arith.constant 9.99999974E-6 : f32
    %42 = vector.broadcast %cst_21 : f32 to vector<1x32xf32>
    %43 = arith.addf %41, %42 : vector<1x32xf32>
    %44 = math.rsqrt %43 : vector<1x32xf32>
    %45 = vector.broadcast %44 : vector<1x32xf32> to vector<8x32xf32>
    %46 = arith.mulf %45, %6 : vector<8x32xf32>
    %47 = arith.mulf %36, %46 : vector<8x32xf32>
    %48 = arith.addf %47, %7 : vector<8x32xf32>
    %cst_22 = arith.constant 0.000000e+00 : f32
    %49 = vector.broadcast %cst_22 : f32 to vector<8x32xf32>
    %50 = arith.maximumf %48, %49 : vector<8x32xf32>
    %cst_23 = arith.constant dense<0.000000e+00> : vector<8x32xf32>
    %51 = tpu.matmul %50, %3, %cst_23 {dimension_numbers = #tpu.dot_dimension_numbers<[1], [0], [0], [1], [0, 0, 1, 1], [], []>} : vector<8x32xf32>, vector<32x32xf32>, vector<8x32xf32> -> vector<8x32xf32>
    %52 = arith.addf %51, %8 : vector<8x32xf32>
    %53 = tpu.iota {dimensions = array<i32: 1>} : vector<8x32xi32>
    %c30_i32 = arith.constant 30 : i32
    %54 = vector.broadcast %c30_i32 : i32 to vector<8x32xi32>
    %55 = arith.cmpi eq, %53, %54 : vector<8x32xi32>
    %56 = arith.negf %52 : vector<8x32xf32>
    %57 = math.exp %56 : vector<8x32xf32>
    %cst_24 = arith.constant 1.000000e+00 : f32
    %58 = vector.broadcast %cst_24 : f32 to vector<8x32xf32>
    %59 = arith.addf %58, %57 : vector<8x32xf32>
    %60 = arith.divf %58, %59 : vector<8x32xf32>
    %61 = arith.select %55, %60, %52 : vector<8x32xi1>, vector<8x32xf32>
    %c0_25 = arith.constant 0 : index
    %c0_26 = arith.constant 0 : index
    %62 = vector.load %arg2[%c0_25, %c0_26] : memref<8x32xf32, #tpu.memory_space<vmem>>, vector<8x32xf32>
    tpu.vector_store %arg2[%c0_25, %c0_26], %61 {strides = array<i32>} : memref<8x32xf32, #tpu.memory_space<vmem>>, vector<8x32xf32>,
    return
  }
}

</mosaic_0001>

<llo_original>
// kernel: decoder_forward_packed.1
$region0: #{decoder_forward_packed.1}
  #allocation0 [shape = 'u32[]', space=smem, size = 0x4, offset = 0x4, fixed_abs, tag = 'smem constant byte address 0x4 - core index']
  #allocation1 [shape = 'u32[144,128]{1,0:T(1,128)}', space=vmem, size = 0x12000, scoped, tag = 'internal scratch']
  %s0 = inlined_call_operand.vmem [shape: f32[8,8], index: 0, kind: input, shape index: {}]
  %s1 = inlined_call_operand.vmem [shape: f32[112,32], index: 1, kind: input, shape index: {}]
  %s2 = inlined_call_operand.hbm [shape: f32[8,32], index: 2, kind: output, shape index: {}]
  %s3 = sld [smem:[#allocation0]]
  $region18: #{decoder_forward_packed.1} parent=0
    _
  %s5 = ssub.s32 1, %s3
  %s6 = scalar_select 0, %s5, %s3
  $region1: #{decoder_forward_packed.1} parent=0
    #allocation2 [shape = 'u8[4096]{0}', space=vmem, size = 0x1000, scoped, tag = 'output window, operand 0, single buffered']
    #allocation3 [shape = 's32[1]{0}', space=sflag, size = 0x4, scoped, tag = 'scoped memory for decoder_forward_packed.1']
    %7 = vsyncpa [#allocation3], 0
    // Predicated region
    $region2: #{decoder_forward_packed.1} parent=1 // pred_check
      _
    $region3: #{decoder_forward_packed.1} parent=1 // pred_check_branch
      %9 = sbr.rel (0) target = $region5
    $region4: #{decoder_forward_packed.1} parent=1 // pred_region
      _
    $region5: #{decoder_forward_packed.1} parent=1 // pred_fallthru
      _
    // Predicated region
    $region6: #{decoder_forward_packed.1} parent=1 // pred_check
      _
    $region7: #{decoder_forward_packed.1} parent=1 // pred_check_branch
      %11 = sbr.rel (0) target = $region9
    $region8: #{decoder_forward_packed.1} parent=1 // pred_region
      _
    $region9: #{decoder_forward_packed.1} parent=1 // pred_fallthru
      _
    %v12 = vld [vmem:[%s0] sm:$0xff]
    %v13 = vld [vmem:[%s1] sm:$0xff]
    %v14 = vld [vmem:[%s1 + $0x8] sm:$0xff]
    %v15 = vld [vmem:[%s1 + $0x10] sm:$0xff]
    %v16 = vld [vmem:[%s1 + $0x18] sm:$0xff]
    %v17 = vld [vmem:[%s1 + $0x20] sm:$0xff]
    %v18 = vld [vmem:[%s1 + $0x28] sm:$0xff]
    %v19 = vld [vmem:[%s1 + $0x30] sm:$0xff]
    %v20 = vld [vmem:[%s1 + $0x38] sm:$0xff]
    %v21 = vld [vmem:[%s1 + $0x40] sm:$0xff]
    %v22 = vld [vmem:[%s1 + $0x48] sm:$0xff]
    %v23 = vld [vmem:[%s1 + $0x50] sm:$0xff]
    %v24 = vld [vmem:[%s1 + $0x58] sm:$0xff]
    %v25 = vld [vmem:[%s1 + $0x60] sm:$0xff]
    %v26 = vld [vmem:[%s1 + $0x68] sm:$0xff]
    %vm27 = vcmask 64512
    %v29 = vsel %vm27, %v12, 0
    %31 = vmatprep.subr.mxu0 0.0
    %32 = vmatpush1.msra.mxu0 %v13
    %33 = vmatprep.subr.mxu0 0.0
    %34 = vmatpush1.msra.mxu0 0.0
    %35 = vmatprep.subr.mxu0 0.0
    %36 = vmatpush1.msra.mxu0 0.0
    %37 = vmatprep.subr.mxu0 0.0
    %38 = vmatpush1.msra.mxu0 0.0
    %39 = vmatprep.subr.mxu0 0.0
    %40 = vmatpush1.msra.mxu0 0.0
    %41 = vmatprep.subr.mxu0 0.0
    %42 = vmatpush1.msra.mxu0 0.0
    %43 = vmatprep.subr.mxu0 0.0
    %44 = vmatpush1.msra.mxu0 0.0
    %45 = vmatprep.subr.mxu0 0.0
    %46 = vmatpush1.msra.mxu0 0.0
    %47 = vmatprep.subr.mxu0 0.0
    %48 = vmatpush1.msra.mxu0 0.0
    %49 = vmatprep.subr.mxu0 0.0
    %50 = vmatpush1.msra.mxu0 0.0
    %51 = vmatprep.subr.mxu0 0.0
    %52 = vmatpush1.msra.mxu0 0.0
    %53 = vmatprep.subr.mxu0 0.0
    %54 = vmatpush1.msra.mxu0 0.0
    %55 = vmatprep.subr.mxu0 0.0
    %56 = vmatpush1.msra.mxu0 0.0
    %57 = vmatprep.subr.mxu0 0.0
    %58 = vmatpush1.msra.mxu0 0.0
    %59 = vmatprep.subr.mxu0 0.0
    %60 = vmatpush1.msra.mxu0 0.0
    %61 = vmatprep.subr.mxu0 0.0
    %62 = vmatpush1.msra.mxu0 0.0
    %63 = vmatprep.subr.mxu0 0.0
    %64 = vmatpush1.msra.mxu0 0.0
    %65 = vmatprep.subr.mxu0 0.0
    %66 = vmatpush1.msra.mxu0 0.0
    %67 = vmatprep.subr.mxu0 0.0
    %68 = vmatpush1.msra.mxu0 0.0
    %69 = vmatprep.subr.mxu0 0.0
    %70 = vmatpush1.msra.mxu0 0.0
    %71 = vmatprep.subr.mxu0 0.0
    %72 = vmatpush1.msra.mxu0 0.0
    %73 = vmatprep.subr.mxu0 0.0
    %74 = vmatpush1.msra.mxu0 0.0
    %75 = vmatprep.subr.mxu0 0.0
    %76 = vmatpush1.msra.mxu0 0.0
    %77 = vmatprep.subr.mxu0 0.0
    %78 = vmatpush1.msra.mxu0 0.0
    %79 = vmatprep.subr.mxu0 0.0
    %80 = vmatpush1.msra.mxu0 0.0
    %81 = vmatprep.subr.mxu0 0.0
    %82 = vmatpush1.msra.mxu0 0.0
    %83 = vmatprep.subr.mxu0 0.0
    %84 = vmatpush1.msra.mxu0 0.0
    %85 = vmatprep.subr.mxu0 0.0
    %86 = vmatpush1.msra.mxu0 0.0
    %87 = vmatprep.subr.mxu0 0.0
    %88 = vmatpush1.msra.mxu0 0.0
    %89 = vmatprep.subr.mxu0 0.0
    %90 = vmatpush1.msra.mxu0 0.0
    %91 = vmatprep.subr.mxu0 0.0
    %92 = vmatpush1.msra.mxu0 0.0
    %93 = vmatprep.subr.mxu0 0.0
    %94 = vmatpush1.msra.mxu0 0.0
    %95 = vmatprep.mubr.f32.mxu0 0.0
    %96 = vmatmul.mubr.f32.gmra.mrb[0].mxu0 %v29
    %v97 = vpop.f32.mrb[0].mxu0
    %v98 = vadd.f32 0.0, %v97
    %v99 = vpop.f32.mrb[0].mxu0
    %100 = vdwg.mxu0
    %vm101 = vcmask 261120
    %v102 = vsel %vm101, %v98, 0.0
    %v103 = vrot.slane %v102, 4
    %v104 = vadd.f32 %v102, %v103
    %v105 = vrot.slane %v104, 2
    %v106 = vadd.f32 %v104, %v105
    %v107 = vrot.slane %v106, 1
    %v108 = vadd.f32 %v106, %v107
    %v109 = vrcp.pop 8.0
    %v110 = vmul.f32 %v108, %v109
    %v111 = vsub.f32 %v98, %v110
    %v112 = vmul.f32 %v111, %v111
    %v113 = vsel %vm101, %v112, 0.0
    %v114 = vrot.slane %v113, 4
    %v115 = vadd.f32 %v113, %v114
    %v116 = vrot.slane %v115, 2
    %v117 = vadd.f32 %v115, %v116
    %v118 = vrot.slane %v117, 1
    %v119 = vadd.f32 %v117, %v118
    %v120 = vmul.f32 %v119, %v109
    %v121 = vadd.f32 %v120, 1e-05
    %v122 = vrsqrt.pop %v121
    %v123 = vmul.f32 %v122, %v22
    %v124 = vmul.f32 %v111, %v123
    %v125 = vadd.f32 %v124, %v23
    %v126 = vmax.f32 %v125, 0.0
    %v128 = vsel %vm101, %v126, 0
    %130 = vmatprep.subr.mxu0 0.0
    %131 = vmatpush1.msra.mxu0 %v14
    %132 = vmatprep.subr.mxu0 0.0
    %133 = vmatpush1.msra.mxu0 %v15
    %134 = vmatprep.subr.mxu0 0.0
    %135 = vmatpush1.msra.mxu0 %v16
    %136 = vmatprep.subr.mxu0 0.0
    %137 = vmatpush1.msra.mxu0 %v17
    %138 = vmatprep.subr.mxu0 0.0
    %139 = vmatpush1.msra.mxu0 0.0
    %140 = vmatprep.subr.mxu0 0.0
    %141 = vmatpush1.msra.mxu0 0.0
    %142 = vmatprep.subr.mxu0 0.0
    %143 = vmatpush1.msra.mxu0 0.0
    %144 = vmatprep.subr.mxu0 0.0
    %145 = vmatpush1.msra.mxu0 0.0
    %146 = vmatprep.subr.mxu0 0.0
    %147 = vmatpush1.msra.mxu0 0.0
    %148 = vmatprep.subr.mxu0 0.0
    %149 = vmatpush1.msra.mxu0 0.0
    %150 = vmatprep.subr.mxu0 0.0
    %151 = vmatpush1.msra.mxu0 0.0
    %152 = vmatprep.subr.mxu0 0.0
    %153 = vmatpush1.msra.mxu0 0.0
    %154 = vmatprep.subr.mxu0 0.0
    %155 = vmatpush1.msra.mxu0 0.0
    %156 = vmatprep.subr.mxu0 0.0
    %157 = vmatpush1.msra.mxu0 0.0
    %158 = vmatprep.subr.mxu0 0.0
    %159 = vmatpush1.msra.mxu0 0.0
    %160 = vmatprep.subr.mxu0 0.0
    %161 = vmatpush1.msra.mxu0 0.0
    %162 = vmatprep.subr.mxu0 0.0
    %163 = vmatpush1.msra.mxu0 0.0
    %164 = vmatprep.subr.mxu0 0.0
    %165 = vmatpush1.msra.mxu0 0.0
    %166 = vmatprep.subr.mxu0 0.0
    %167 = vmatpush1.msra.mxu0 0.0
    %168 = vmatprep.subr.mxu0 0.0
    %169 = vmatpush1.msra.mxu0 0.0
    %170 = vmatprep.subr.mxu0 0.0
    %171 = vmatpush1.msra.mxu0 0.0
    %172 = vmatprep.subr.mxu0 0.0
    %173 = vmatpush1.msra.mxu0 0.0
    %174 = vmatprep.subr.mxu0 0.0
    %175 = vmatpush1.msra.mxu0 0.0
    %176 = vmatprep.subr.mxu0 0.0
    %177 = vmatpush1.msra.mxu0 0.0
    %178 = vmatprep.subr.mxu0 0.0
    %179 = vmatpush1.msra.mxu0 0.0
    %180 = vmatprep.subr.mxu0 0.0
    %181 = vmatpush1.msra.mxu0 0.0
    %182 = vmatprep.subr.mxu0 0.0
    %183 = vmatpush1.msra.mxu0 0.0
    %184 = vmatprep.subr.mxu0 0.0
    %185 = vmatpush1.msra.mxu0 0.0
    %186 = vmatprep.subr.mxu0 0.0
    %187 = vmatpush1.msra.mxu0 0.0
    %188 = vmatprep.subr.mxu0 0.0
    %189 = vmatpush1.msra.mxu0 0.0
    %190 = vmatprep.subr.mxu0 0.0
    %191 = vmatpush1.msra.mxu0 0.0
    %192 = vmatprep.subr.mxu0 0.0
    %193 = vmatpush1.msra.mxu0 0.0
    %194 = vmatprep.mubr.f32.mxu0 0.0
    %195 = vmatmul.mubr.f32.gmra.mrb[0].mxu0 %v128
    %v196 = vpop.f32.mrb[0].mxu0
    %v197 = vadd.f32 0.0, %v196
    %v198 = vpop.f32.mrb[0].mxu0
    %199 = vdwg.mxu0
    %v200 = vsel %vm101, %v197, 0.0
    %v201 = vrot.slane %v200, 4
    %v202 = vadd.f32 %v200, %v201
    %v203 = vrot.slane %v202, 2
    %v204 = vadd.f32 %v202, %v203
    %v205 = vrot.slane %v204, 1
    %v206 = vadd.f32 %v204, %v205
    %v207 = vmul.f32 %v206, %v109
    %v208 = vsub.f32 %v197, %v207
    %v209 = vmul.f32 %v208, %v208
    %v210 = vsel %vm101, %v209, 0.0
    %v211 = vrot.slane %v210, 4
    %v212 = vadd.f32 %v210, %v211
    %v213 = vrot.slane %v212, 2
    %v214 = vadd.f32 %v212, %v213
    %v215 = vrot.slane %v214, 1
    %v216 = vadd.f32 %v214, %v215
    %v217 = vmul.f32 %v216, %v109
    %v218 = vadd.f32 %v217, 1e-05
    %v219 = vrsqrt.pop %v218
    %v220 = vmul.f32 %v219, %v24
    %v221 = vmul.f32 %v208, %v220
    %v222 = vadd.f32 %v221, %v25
    %v223 = vmax.f32 %v222, 0.0
    %v225 = vsel %vm101, %v223, 0
    %227 = vmatprep.subr.mxu0 0.0
    %228 = vmatpush1.msra.mxu0 %v18
    %229 = vmatprep.subr.mxu0 0.0
    %230 = vmatpush1.msra.mxu0 %v19
    %231 = vmatprep.subr.mxu0 0.0
    %232 = vmatpush1.msra.mxu0 %v20
    %233 = vmatprep.subr.mxu0 0.0
    %234 = vmatpush1.msra.mxu0 %v21
    %235 = vmatprep.subr.mxu0 0.0
    %236 = vmatpush1.msra.mxu0 0.0
    %237 = vmatprep.subr.mxu0 0.0
    %238 = vmatpush1.msra.mxu0 0.0
    %239 = vmatprep.subr.mxu0 0.0
    %240 = vmatpush1.msra.mxu0 0.0
    %241 = vmatprep.subr.mxu0 0.0
    %242 = vmatpush1.msra.mxu0 0.0
    %243 = vmatprep.subr.mxu0 0.0
    %244 = vmatpush1.msra.mxu0 0.0
    %245 = vmatprep.subr.mxu0 0.0
    %246 = vmatpush1.msra.mxu0 0.0
    %247 = vmatprep.subr.mxu0 0.0
    %248 = vmatpush1.msra.mxu0 0.0
    %249 = vmatprep.subr.mxu0 0.0
    %250 = vmatpush1.msra.mxu0 0.0
    %251 = vmatprep.subr.mxu0 0.0
    %252 = vmatpush1.msra.mxu0 0.0
    %253 = vmatprep.subr.mxu0 0.0
    %254 = vmatpush1.msra.mxu0 0.0
    %255 = vmatprep.subr.mxu0 0.0
    %256 = vmatpush1.msra.mxu0 0.0
    %257 = vmatprep.subr.mxu0 0.0
    %258 = vmatpush1.msra.mxu0 0.0
    %259 = vmatprep.subr.mxu0 0.0
    %260 = vmatpush1.msra.mxu0 0.0
    %261 = vmatprep.subr.mxu0 0.0
    %262 = vmatpush1.msra.mxu0 0.0
    %263 = vmatprep.subr.mxu0 0.0
    %264 = vmatpush1.msra.mxu0 0.0
    %265 = vmatprep.subr.mxu0 0.0
    %266 = vmatpush1.msra.mxu0 0.0
    %267 = vmatprep.subr.mxu0 0.0
    %268 = vmatpush1.msra.mxu0 0.0
    %269 = vmatprep.subr.mxu0 0.0
    %270 = vmatpush1.msra.mxu0 0.0
    %271 = vmatprep.subr.mxu0 0.0
    %272 = vmatpush1.msra.mxu0 0.0
    %273 = vmatprep.subr.mxu0 0.0
    %274 = vmatpush1.msra.mxu0 0.0
    %275 = vmatprep.subr.mxu0 0.0
    %276 = vmatpush1.msra.mxu0 0.0
    %277 = vmatprep.subr.mxu0 0.0
    %278 = vmatpush1.msra.mxu0 0.0
    %279 = vmatprep.subr.mxu0 0.0
    %280 = vmatpush1.msra.mxu0 0.0
    %281 = vmatprep.subr.mxu0 0.0
    %282 = vmatpush1.msra.mxu0 0.0
    %283 = vmatprep.subr.mxu0 0.0
    %284 = vmatpush1.msra.mxu0 0.0
    %285 = vmatprep.subr.mxu0 0.0
    %286 = vmatpush1.msra.mxu0 0.0
    %287 = vmatprep.subr.mxu0 0.0
    %288 = vmatpush1.msra.mxu0 0.0
    %289 = vmatprep.subr.mxu0 0.0
    %290 = vmatpush1.msra.mxu0 0.0
    %291 = vmatprep.mubr.f32.mxu0 0.0
    %292 = vmatmul.mubr.f32.gmra.mrb[0].mxu0 %v225
    %v293 = vpop.f32.mrb[0].mxu0
    %v294 = vadd.f32 %v26, %v293
    %v295 = vpop.f32.mrb[0].mxu0
    %296 = vdwg.mxu0
    %v297 = vlaneseq
    %v298 = vand.u32 %v297, 127
    %vm299 = vcmp.eq.s32.totalorder %v298, 30
    %v300 = vxor.u32 %v294, 2147483648
    %v301 = vmul.f32 %v300, 1.442695
    %v302 = vpow.pop %v301
    %v303 = vadd.f32 %v302, 1.0
    %v304 = vrcp.pop %v303
    %v305 = vmul.f32 1.0, %v304
    %v306 = vsel %vm299, %v305, %v294
    %307 = vst.msk [vmem:[#allocation2] sm:$0xff] %vm101, %v306
    // Predicated region
    $region10: #{decoder_forward_packed.1} parent=1 // pred_check
      _
    $region11: #{decoder_forward_packed.1} parent=1 // pred_check_branch
      %309 = sbr.rel (0) target = $region13
    $region12: #{decoder_forward_packed.1} parent=1 // pred_region
      %s311 = ssub.s32 128, 128
      %312 = vsyncadd [#allocation3], %s311
      %s314 = sshll.u32 [#allocation2], 4
      %s315 = int_to_ptr.vmem [resolvable:$true] %s314
      %317 = dma.vmem_to_hbm [thread:$0]  %s315, 128, %s2, [#allocation3]
    $region13: #{decoder_forward_packed.1} parent=1 // pred_fallthru
      _
    // Predicated region
    $region14: #{decoder_forward_packed.1} parent=1 // pred_check
      _
    $region15: #{decoder_forward_packed.1} parent=1 // pred_check_branch
      %319 = sbr.rel (0) target = $region17
    $region16: #{decoder_forward_packed.1} parent=1 // pred_region
      %320 = dma.done [#allocation3], 128
    $region17: #{decoder_forward_packed.1} parent=1 // pred_fallthru
      _
    %321 = vsyncpa [#allocation3], 1

</llo_original>
